<compile_context>
chip_gen: v5e
topology: v5e:2x2
jax: 0.10.0
libtpu: 0.0.40
codegen_flags: <defaults>
</compile_context>

<pallas_src>
import functools
import math

import jax
import jax.numpy as jnp
from jax.experimental import pallas as pl
from jax.experimental.pallas import tpu as pltpu


def _lora_add_kernel(x_ref, lhs_ref, rhs_ref, o_ref):
    """o = x + (lhs @ rhs), where lhs:(tr, r), rhs:(r, tc), x/o:(tr, tc)."""
    delta = jnp.dot(lhs_ref[...], rhs_ref[...], preferred_element_type=jnp.float32)
    o_ref[...] = x_ref[...] + delta.astype(x_ref.dtype)


def _pick_tile(dim, target, align):
    """Largest divisor of `dim` that is <= target and a multiple of `align`,
    else the full dim (always a legal block size)."""
    if dim <= target:
        return dim
    t = (target // align) * align
    while t >= align:
        if dim % t == 0:
            return t
        t -= align
    return dim


def _vmem_budget(t_r, t_c, r, x_itemsize, ab_itemsize):
    # x + out blocks double-buffered, plus tiny A/B blocks double-buffered, + slack.
    big = 2 * 2 * t_r * t_c * x_itemsize
    small = 2 * 2 * (t_r * r + r * t_c) * ab_itemsize
    need = big + small + (2 << 20)
    return int(min(max(need, 32 << 20), 48 << 20))   # v7x physical VMEM is 64 MiB


def lora_forward(x, lora_A, lora_B, *, r, alpha=1.0, fan_in_fan_out=False,
                 tile_rows=512, tile_cols=512, donate_x=False):
    """Pallas implementation of LoraLayer.forward (dropout_prob == 0)."""
    if r == 0:
        return x

    scaling = float(alpha) / float(r)
    in_features, r_dim = lora_A.shape
    r_dim2, out_features = lora_B.shape
    assert r_dim == r and r_dim2 == r

    # Fold the scalar into the tiny A factor once (O(r*in) work in the wrapper).
    a_scaled = lora_A * jnp.asarray(scaling, dtype=lora_A.dtype)

    if not fan_in_fan_out:
        # X: (out_features, in_features); delta = (scaling * A @ B).T = B.T @ (scaling*A).T
        assert x.shape == (out_features, in_features)
        lhs = lora_B.T            # (out_features, r)
        rhs = a_scaled.T          # (r, in_features)
        rows, cols = out_features, in_features
    else:
        # X: (in_features, out_features); delta = (scaling * A) @ B
        assert x.shape == (in_features, out_features)
        lhs = a_scaled            # (in_features, r)
        rhs = lora_B              # (r, out_features)
        rows, cols = in_features, out_features

    t_r = _pick_tile(rows, tile_rows, 8)      # sublane-aligned (or full dim)
    t_c = _pick_tile(cols, tile_cols, 128)    # lane-dense stores (or full dim)
    grid = (rows // t_r, cols // t_c)

    compiler_params = pltpu.CompilerParams(
        dimension_semantics=("parallel", "parallel"),
        vmem_limit_bytes=_vmem_budget(
            t_r, t_c, r,
            jnp.dtype(x.dtype).itemsize, jnp.dtype(lora_A.dtype).itemsize),
    )

    extra = {}
    if donate_x:
        # Write the updated weight in place (avoids a second HBM weight buffer).
        extra["input_output_aliases"] = {0: 0}

    return pl.pallas_call(
        _lora_add_kernel,
        out_shape=jax.ShapeDtypeStruct((rows, cols), x.dtype),
        grid_spec=pltpu.PrefetchScalarGridSpec(
            num_scalar_prefetch=0,
            grid=grid,
            in_specs=[
                pl.BlockSpec((t_r, t_c), lambda i, j: (i, j)),   # X tile
                pl.BlockSpec((t_r, r), lambda i, j: (i, 0)),     # lhs rows
                pl.BlockSpec((r, t_c), lambda i, j: (0, j)),     # rhs cols
            ],
            out_specs=pl.BlockSpec((t_r, t_c), lambda i, j: (i, j)),
        ),
        compiler_params=compiler_params,
        **extra,
    )(x, lhs, rhs)


def init_lora_params(key, in_features, out_features, r, dtype=jnp.float32):
    """Deterministic re-implementation of LoraLayer._init_lora.

    lora_A: kaiming_uniform_(a=sqrt(5)) on shape (in_features, r)
            -> U(-1/sqrt(fan_in), 1/sqrt(fan_in)) with torch fan_in = r.
    lora_B: zeros (r, out_features).
    """
    bound = 1.0 / math.sqrt(r)
    lora_A = jax.random.uniform(key, (in_features, r), dtype=dtype,
                                minval=-bound, maxval=bound)
    lora_B = jnp.zeros((r, out_features), dtype=dtype)
    return lora_A, lora_B


if __name__ == "__main__":
    # Small, tile-friendly shapes consistent with the module:
    # Linear weight X: (out_features, in_features) = (128, 256).
    out_features, in_features, r, alpha = 128, 256, 8, 16
    key = jax.random.PRNGKey(0)
    kx, ka, kb, kx2 = jax.random.split(key, 4)

    x = jax.random.normal(kx, (out_features, in_features), dtype=jnp.float32)
    lora_A, lora_B = init_lora_params(ka, in_features, out_features, r)
    # lora_B is zeros per __init__; use a perturbed copy to exercise the matmul path.
    lora_B_nz = 0.01 * jax.random.normal(kb, lora_B.shape, dtype=jnp.float32)
    scaling = alpha / r

    # TODO(synk): nn.Dropout path (dropout_prob > 0) not implemented; module default is Identity.

    # 1) Module-faithful run (B == 0 -> output == X).
    out0 = lora_forward(x, lora_A, lora_B, r=r, alpha=alpha, fan_in_fan_out=False)
    jax.block_until_ready(out0)
    assert jnp.allclose(out0, x, atol=1e-6)

    # 2) fan_in_fan_out=False (default) vs pure-JAX reference.
    out = lora_forward(x, lora_A, lora_B_nz, r=r, alpha=alpha, fan_in_fan_out=False)
    jax.block_until_ready(out)
    ref = x + (lora_A @ lora_B_nz * scaling).T
    assert jnp.allclose(out, ref, atol=1e-5, rtol=1e-5)

    # 3) fan_in_fan_out=True vs pure-JAX reference.
    x2 = jax.random.normal(kx2, (in_features, out_features), dtype=jnp.float32)
    out2 = lora_forward(x2, lora_A, lora_B_nz, r=r, alpha=alpha, fan_in_fan_out=True)
    jax.block_until_ready(out2)
    ref2 = x2 + lora_A @ lora_B_nz * scaling
    assert jnp.allclose(out2, ref2, atol=1e-5, rtol=1e-5)

    print("KERNEL_OK")
</pallas_src>

<mosaic_0001>
module attributes {stable_mosaic.version = 11 : i64} {
  func.func @_lora_add_kernel(%arg0: i32, %arg1: i32, %arg2: memref<128x256xf32, #tpu.memory_space<vmem>>, %arg3: memref<128x8xf32, #tpu.memory_space<vmem>>, %arg4: memref<8x256xf32, #tpu.memory_space<vmem>>, %arg5: memref<128x256xf32, #tpu.memory_space<vmem>>) attributes {dimension_semantics = [#tpu.dimension_semantics<parallel>, #tpu.dimension_semantics<parallel>], iteration_bounds = array<i64: 1, 1>, scalar_prefetch = 0 : i64, scratch_operands = 0 : i64, tpu.core_type = #tpu.core_type<tc>, window_params = [{transform_indices = @transform_0, window_bounds = array<i64: 128, 256>}, {transform_indices = @transform_1, window_bounds = array<i64: 128, 8>}, {transform_indices = @transform_2, window_bounds = array<i64: 8, 256>}, {transform_indices = @transform_3, window_bounds = array<i64: 128, 256>}]} {
    %c0 = arith.constant 0 : index
    %c0_0 = arith.constant 0 : index
    %0 = vector.load %arg3[%c0, %c0_0] : memref<128x8xf32, #tpu.memory_space<vmem>>, vector<128x8xf32>
    %c0_1 = arith.constant 0 : index
    %c0_2 = arith.constant 0 : index
    %1 = vector.load %arg4[%c0_1, %c0_2] : memref<8x256xf32, #tpu.memory_space<vmem>>, vector<8x256xf32>
    %cst = arith.constant dense<0.000000e+00> : vector<128x256xf32>
    %2 = tpu.matmul %0, %1, %cst {dimension_numbers = #tpu.dot_dimension_numbers<[1], [0], [0], [1], [0, 0, 1, 1], [], []>} : vector<128x8xf32>, vector<8x256xf32>, vector<128x256xf32> -> vector<128x256xf32>
    %c0_3 = arith.constant 0 : index
    %c0_4 = arith.constant 0 : index
    %3 = vector.load %arg2[%c0_3, %c0_4] : memref<128x256xf32, #tpu.memory_space<vmem>>, vector<128x256xf32>
    %4 = arith.addf %3, %2 : vector<128x256xf32>
    %c0_5 = arith.constant 0 : index
    %c0_6 = arith.constant 0 : index
    %5 = vector.load %arg5[%c0_5, %c0_6] : memref<128x256xf32, #tpu.memory_space<vmem>>, vector<128x256xf32>
    tpu.vector_store %arg5[%c0_5, %c0_6], %4 {strides = array<i32>} : memref<128x256xf32, #tpu.memory_space<vmem>>, vector<128x256xf32>,
    return
  }
  func.func @transform_0(%arg0: i32, %arg1: i32) -> (i32, i32) {
    %c0_i32 = arith.constant 0 : i32
    return %arg0, %arg1 : i32, i32
  }
  func.func @transform_1(%arg0: i32, %arg1: i32) -> (i32, i32) {
    %c0_i32 = arith.constant 0 : i32
    %c0_i32_0 = arith.constant 0 : i32
    return %arg0, %c0_i32 : i32, i32
  }
  func.func @transform_2(%arg0: i32, %arg1: i32) -> (i32, i32) {
    %c0_i32 = arith.constant 0 : i32
    %c0_i32_0 = arith.constant 0 : i32
    return %c0_i32, %arg1 : i32, i32
  }
  func.func @transform_3(%arg0: i32, %arg1: i32) -> (i32, i32) {
    %c0_i32 = arith.constant 0 : i32
    return %arg0, %arg1 : i32, i32
  }
}

</mosaic_0001>

<llo_original>
// kernel: tpu_custom_call.1
$region0: #{tpu_custom_call.1}
  #allocation0 [shape = 'u32[]', space=smem, size = 0x4, offset = 0x4, fixed_abs, tag = 'smem constant byte address 0x4 - core index']
  #allocation1 [shape = 'u32[72,128]{1,0:T(1,128)}', space=vmem, size = 0x9000, scoped, tag = 'internal scratch']
  %s0 = inlined_call_operand.hbm [shape: f32[128,256], index: 0, kind: input, shape index: {}]
  %s1 = inlined_call_operand.vmem [shape: f32[128,8], index: 1, kind: input, shape index: {}]
  %s2 = inlined_call_operand.vmem [shape: f32[8,256], index: 2, kind: input, shape index: {}]
  %s3 = inlined_call_operand.hbm [shape: f32[128,256], index: 3, kind: output, shape index: {}]
  %s4 = sld [smem:[#allocation0]]
  $region26: #{tpu_custom_call.1} parent=0
    _
  %s6 = ssub.s32 1, %s4
  %s7 = scalar_select 0, %s6, %s4
  $region1: #{tpu_custom_call.1} parent=0
    #allocation2 [shape = 'u8[131072]{0}', space=vmem, size = 0x20000, scoped, tag = 'input window, operand 0, single buffered']
    #allocation3 [shape = 's32[1]{0}', space=sflag, size = 0x4, scoped, tag = 'scoped memory for tpu_custom_call.1']
    #allocation4 [shape = 's32[1]{0}', space=sflag, size = 0x4, scoped, tag = 'scoped memory for tpu_custom_call.1']
    #allocation5 [shape = 'u8[131072]{0}', space=vmem, size = 0x20000, scoped, tag = 'output window, operand 0, single buffered']
    %8 = vsyncpa [#allocation3], 0
    %9 = vsyncpa [#allocation4], 0
    // Predicated region
    $region2: #{tpu_custom_call.1} parent=1 // pred_check
      _
    $region3: #{tpu_custom_call.1} parent=1 // pred_check_branch
      %11 = sbr.rel (0) target = $region5
    $region4: #{tpu_custom_call.1} parent=1 // pred_region
      %13 = vsyncadd [#allocation3], 0
      %s14 = sshll.u32 %s0, 4
      %s15 = int_to_ptr.hbm [resolvable:$true] %s14
      %s16 = sshll.u32 [#allocation2], 4
      %s17 = int_to_ptr.vmem [resolvable:$true] %s16
      %22 = dma.hbm_to_vmem [thread:$0]  %s15, 4096, %s17, [#allocation3], 256, 256, 16
    $region5: #{tpu_custom_call.1} parent=1 // pred_fallthru
      _
    // Predicated region
    $region6: #{tpu_custom_call.1} parent=1 // pred_check
      _
    $region7: #{tpu_custom_call.1} parent=1 // pred_check_branch
      %24 = sbr.rel (0) target = $region9
    $region8: #{tpu_custom_call.1} parent=1 // pred_region
      _
    $region9: #{tpu_custom_call.1} parent=1 // pred_fallthru
      _
    // Predicated region
    $region10: #{tpu_custom_call.1} parent=1 // pred_check
      _
    $region11: #{tpu_custom_call.1} parent=1 // pred_check_branch
      %26 = sbr.rel (0) target = $region13
    $region12: #{tpu_custom_call.1} parent=1 // pred_region
      _
    $region13: #{tpu_custom_call.1} parent=1 // pred_fallthru
      _
    // Predicated region
    $region14: #{tpu_custom_call.1} parent=1 // pred_check
      _
    $region15: #{tpu_custom_call.1} parent=1 // pred_check_branch
      %28 = sbr.rel (0) target = $region17
    $region16: #{tpu_custom_call.1} parent=1 // pred_region
      %30 = dma.done [#allocation3], 4096
    $region17: #{tpu_custom_call.1} parent=1 // pred_fallthru
      _
    %v31 = vld [vmem:[%s1] sm:$0xff]
    %v32 = vld [vmem:[%s1 + $0x8] sm:$0xff]
    %v33 = vld [vmem:[%s1 + $0x10] sm:$0xff]
    %v34 = vld [vmem:[%s1 + $0x18] sm:$0xff]
    %v35 = vld [vmem:[%s1 + $0x20] sm:$0xff]
    %v36 = vld [vmem:[%s1 + $0x28] sm:$0xff]
    %v37 = vld [vmem:[%s1 + $0x30] sm:$0xff]
    %v38 = vld [vmem:[%s1 + $0x38] sm:$0xff]
    %v39 = vld [vmem:[%s1 + $0x40] sm:$0xff]
    %v40 = vld [vmem:[%s1 + $0x48] sm:$0xff]
    %v41 = vld [vmem:[%s1 + $0x50] sm:$0xff]
    %v42 = vld [vmem:[%s1 + $0x58] sm:$0xff]
    %v43 = vld [vmem:[%s1 + $0x60] sm:$0xff]
    %v44 = vld [vmem:[%s1 + $0x68] sm:$0xff]
    %v45 = vld [vmem:[%s1 + $0x70] sm:$0xff]
    %v46 = vld [vmem:[%s1 + $0x78] sm:$0xff]
    %v47 = vld [vmem:[%s2] sm:$0xff]
    %v48 = vld [vmem:[%s2 + $0x8] sm:$0xff]
    %vm49 = vcmask 64512
    %v51 = vsel %vm49, %v31, 0
    %v54 = vsel %vm49, %v32, 0
    %v57 = vsel %vm49, %v33, 0
    %v60 = vsel %vm49, %v34, 0
    %v63 = vsel %vm49, %v35, 0
    %v66 = vsel %vm49, %v36, 0
    %v69 = vsel %vm49, %v37, 0
    %v72 = vsel %vm49, %v38, 0
    %v75 = vsel %vm49, %v39, 0
    %v78 = vsel %vm49, %v40, 0
    %v81 = vsel %vm49, %v41, 0
    %v84 = vsel %vm49, %v42, 0
    %v87 = vsel %vm49, %v43, 0
    %v90 = vsel %vm49, %v44, 0
    %v93 = vsel %vm49, %v45, 0
    %v96 = vsel %vm49, %v46, 0
    %98 = vmatpush.msra.mxu0 0.0
    %99 = vmatpush.msra.mxu0 0.0
    %100 = vmatpush.msra.mxu0 0.0
    %101 = vmatpush.msra.mxu0 0.0
    %102 = vmatpush.msra.mxu0 0.0
    %103 = vmatpush.msra.mxu0 0.0
    %104 = vmatpush.msra.mxu0 0.0
    %105 = vmatpush.msra.mxu0 0.0
    %106 = vmatpush.msra.mxu0 0.0
    %107 = vmatpush.msra.mxu0 0.0
    %108 = vmatpush.msra.mxu0 0.0
    %109 = vmatpush.msra.mxu0 0.0
    %110 = vmatpush.msra.mxu0 0.0
    %111 = vmatpush.msra.mxu0 0.0
    %112 = vmatpush.msra.mxu0 0.0
    %113 = vmatpush.msra.mxu0 %v47
    %114 = vmatmul.f32.gmra.mxu0 %v51
    %v115 = vpop.f32.mrf.mxu0
    %v116 = vadd.f32 0.0, %v115
    %117 = vmatmul.f32.gmra.mxu0 %v54
    %v118 = vpop.f32.mrf.mxu0
    %v119 = vadd.f32 0.0, %v118
    %120 = vmatmul.f32.gmra.mxu0 %v57
    %v121 = vpop.f32.mrf.mxu0
    %v122 = vadd.f32 0.0, %v121
    %123 = vmatmul.f32.gmra.mxu0 %v60
    %v124 = vpop.f32.mrf.mxu0
    %v125 = vadd.f32 0.0, %v124
    %126 = vmatmul.f32.gmra.mxu0 %v63
    %v127 = vpop.f32.mrf.mxu0
    %v128 = vadd.f32 0.0, %v127
    %129 = vmatmul.f32.gmra.mxu0 %v66
    %v130 = vpop.f32.mrf.mxu0
    %v131 = vadd.f32 0.0, %v130
    %132 = vmatmul.f32.gmra.mxu0 %v69
    %v133 = vpop.f32.mrf.mxu0
    %v134 = vadd.f32 0.0, %v133
    %135 = vmatmul.f32.gmra.mxu0 %v72
    %v136 = vpop.f32.mrf.mxu0
    %v137 = vadd.f32 0.0, %v136
    %138 = vmatmul.f32.gmra.mxu0 %v75
    %v139 = vpop.f32.mrf.mxu0
    %v140 = vadd.f32 0.0, %v139
    %141 = vmatmul.f32.gmra.mxu0 %v78
    %v142 = vpop.f32.mrf.mxu0
    %v143 = vadd.f32 0.0, %v142
    %144 = vmatmul.f32.gmra.mxu0 %v81
    %v145 = vpop.f32.mrf.mxu0
    %v146 = vadd.f32 0.0, %v145
    %147 = vmatmul.f32.gmra.mxu0 %v84
    %v148 = vpop.f32.mrf.mxu0
    %v149 = vadd.f32 0.0, %v148
    %150 = vmatmul.f32.gmra.mxu0 %v87
    %v151 = vpop.f32.mrf.mxu0
    %v152 = vadd.f32 0.0, %v151
    %153 = vmatmul.f32.gmra.mxu0 %v90
    %v154 = vpop.f32.mrf.mxu0
    %v155 = vadd.f32 0.0, %v154
    %156 = vmatmul.f32.gmra.mxu0 %v93
    %v157 = vpop.f32.mrf.mxu0
    %v158 = vadd.f32 0.0, %v157
    %159 = vmatmul.f32.gmra.mxu0 %v96
    %v160 = vpop.f32.mrf.mxu0
    %v161 = vadd.f32 0.0, %v160
    %162 = vdwg.mxu0
    %163 = vmatpush.msra.mxu0 0.0
    %164 = vmatpush.msra.mxu0 0.0
    %165 = vmatpush.msra.mxu0 0.0
    %166 = vmatpush.msra.mxu0 0.0
    %167 = vmatpush.msra.mxu0 0.0
    %168 = vmatpush.msra.mxu0 0.0
    %169 = vmatpush.msra.mxu0 0.0
    %170 = vmatpush.msra.mxu0 0.0
    %171 = vmatpush.msra.mxu0 0.0
    %172 = vmatpush.msra.mxu0 0.0
    %173 = vmatpush.msra.mxu0 0.0
    %174 = vmatpush.msra.mxu0 0.0
    %175 = vmatpush.msra.mxu0 0.0
    %176 = vmatpush.msra.mxu0 0.0
    %177 = vmatpush.msra.mxu0 0.0
    %178 = vmatpush.msra.mxu0 %v48
    %179 = vmatmul.f32.gmra.mxu0 %v51
    %v180 = vpop.f32.mrf.mxu0
    %v181 = vadd.f32 0.0, %v180
    %182 = vmatmul.f32.gmra.mxu0 %v54
    %v183 = vpop.f32.mrf.mxu0
    %v184 = vadd.f32 0.0, %v183
    %185 = vmatmul.f32.gmra.mxu0 %v57
    %v186 = vpop.f32.mrf.mxu0
    %v187 = vadd.f32 0.0, %v186
    %188 = vmatmul.f32.gmra.mxu0 %v60
    %v189 = vpop.f32.mrf.mxu0
    %v190 = vadd.f32 0.0, %v189
    %191 = vmatmul.f32.gmra.mxu0 %v63
    %v192 = vpop.f32.mrf.mxu0
    %v193 = vadd.f32 0.0, %v192
    %194 = vmatmul.f32.gmra.mxu0 %v66
    %v195 = vpop.f32.mrf.mxu0
    %v196 = vadd.f32 0.0, %v195
    %197 = vmatmul.f32.gmra.mxu0 %v69
    %v198 = vpop.f32.mrf.mxu0
    %v199 = vadd.f32 0.0, %v198
    %200 = vmatmul.f32.gmra.mxu0 %v72
    %v201 = vpop.f32.mrf.mxu0
    %v202 = vadd.f32 0.0, %v201
    %203 = vmatmul.f32.gmra.mxu0 %v75
    %v204 = vpop.f32.mrf.mxu0
    %v205 = vadd.f32 0.0, %v204
    %206 = vmatmul.f32.gmra.mxu0 %v78
    %v207 = vpop.f32.mrf.mxu0
    %v208 = vadd.f32 0.0, %v207
    %209 = vmatmul.f32.gmra.mxu0 %v81
    %v210 = vpop.f32.mrf.mxu0
    %v211 = vadd.f32 0.0, %v210
    %212 = vmatmul.f32.gmra.mxu0 %v84
    %v213 = vpop.f32.mrf.mxu0
    %v214 = vadd.f32 0.0, %v213
    %215 = vmatmul.f32.gmra.mxu0 %v87
    %v216 = vpop.f32.mrf.mxu0
    %v217 = vadd.f32 0.0, %v216
    %218 = vmatmul.f32.gmra.mxu0 %v90
    %v219 = vpop.f32.mrf.mxu0
    %v220 = vadd.f32 0.0, %v219
    %221 = vmatmul.f32.gmra.mxu0 %v93
    %v222 = vpop.f32.mrf.mxu0
    %v223 = vadd.f32 0.0, %v222
    %224 = vmatmul.f32.gmra.mxu0 %v96
    %v225 = vpop.f32.mrf.mxu0
    %v226 = vadd.f32 0.0, %v225
    %227 = vdwg.mxu0
    %v228 = vld [vmem:[#allocation2] sm:$0xff]
    %v229 = vld [vmem:[#allocation2 + $0x8] sm:$0xff]
    %v230 = vld [vmem:[#allocation2 + $0x10] sm:$0xff]
    %v231 = vld [vmem:[#allocation2 + $0x18] sm:$0xff]
    %v232 = vld [vmem:[#allocation2 + $0x20] sm:$0xff]
    %v233 = vld [vmem:[#allocation2 + $0x28] sm:$0xff]
    %v234 = vld [vmem:[#allocation2 + $0x30] sm:$0xff]
    %v235 = vld [vmem:[#allocation2 + $0x38] sm:$0xff]
    %v236 = vld [vmem:[#allocation2 + $0x40] sm:$0xff]
    %v237 = vld [vmem:[#allocation2 + $0x48] sm:$0xff]
    %v238 = vld [vmem:[#allocation2 + $0x50] sm:$0xff]
    %v239 = vld [vmem:[#allocation2 + $0x58] sm:$0xff]
    %v240 = vld [vmem:[#allocation2 + $0x60] sm:$0xff]
    %v241 = vld [vmem:[#allocation2 + $0x68] sm:$0xff]
    %v242 = vld [vmem:[#allocation2 + $0x70] sm:$0xff]
    %v243 = vld [vmem:[#allocation2 + $0x78] sm:$0xff]
    %v244 = vld [vmem:[#allocation2 + $0x80] sm:$0xff]
    %v245 = vld [vmem:[#allocation2 + $0x88] sm:$0xff]
    %v246 = vld [vmem:[#allocation2 + $0x90] sm:$0xff]
    %v247 = vld [vmem:[#allocation2 + $0x98] sm:$0xff]
    %v248 = vld [vmem:[#allocation2 + $0xa0] sm:$0xff]
    %v249 = vld [vmem:[#allocation2 + $0xa8] sm:$0xff]
    %v250 = vld [vmem:[#allocation2 + $0xb0] sm:$0xff]
    %v251 = vld [vmem:[#allocation2 + $0xb8] sm:$0xff]
    %v252 = vld [vmem:[#allocation2 + $0xc0] sm:$0xff]
    %v253 = vld [vmem:[#allocation2 + $0xc8] sm:$0xff]
    %v254 = vld [vmem:[#allocation2 + $0xd0] sm:$0xff]
    %v255 = vld [vmem:[#allocation2 + $0xd8] sm:$0xff]
    %v256 = vld [vmem:[#allocation2 + $0xe0] sm:$0xff]
    %v257 = vld [vmem:[#allocation2 + $0xe8] sm:$0xff]
    %v258 = vld [vmem:[#allocation2 + $0xf0] sm:$0xff]
    %v259 = vld [vmem:[#allocation2 + $0xf8] sm:$0xff]
    %v260 = vadd.f32 %v228, %v116
    %v261 = vadd.f32 %v229, %v181
    %v262 = vadd.f32 %v230, %v119
    %v263 = vadd.f32 %v231, %v184
    %v264 = vadd.f32 %v232, %v122
    %v265 = vadd.f32 %v233, %v187
    %v266 = vadd.f32 %v234, %v125
    %v267 = vadd.f32 %v235, %v190
    %v268 = vadd.f32 %v236, %v128
    %v269 = vadd.f32 %v237, %v193
    %v270 = vadd.f32 %v238, %v131
    %v271 = vadd.f32 %v239, %v196
    %v272 = vadd.f32 %v240, %v134
    %v273 = vadd.f32 %v241, %v199
    %v274 = vadd.f32 %v242, %v137
    %v275 = vadd.f32 %v243, %v202
    %v276 = vadd.f32 %v244, %v140
    %v277 = vadd.f32 %v245, %v205
    %v278 = vadd.f32 %v246, %v143
    %v279 = vadd.f32 %v247, %v208
    %v280 = vadd.f32 %v248, %v146
    %v281 = vadd.f32 %v249, %v211
    %v282 = vadd.f32 %v250, %v149
    %v283 = vadd.f32 %v251, %v214
    %v284 = vadd.f32 %v252, %v152
    %v285 = vadd.f32 %v253, %v217
    %v286 = vadd.f32 %v254, %v155
    %v287 = vadd.f32 %v255, %v220
    %v288 = vadd.f32 %v256, %v158
    %v289 = vadd.f32 %v257, %v223
    %v290 = vadd.f32 %v258, %v161
    %v291 = vadd.f32 %v259, %v226
    %292 = vst [vmem:[#allocation5] sm:$0xff] %v260
    %293 = vst [vmem:[#allocation5 + $0x8] sm:$0xff] %v261
    %294 = vst [vmem:[#allocation5 + $0x10] sm:$0xff] %v262
    %295 = vst [vmem:[#allocation5 + $0x18] sm:$0xff] %v263
    %296 = vst [vmem:[#allocation5 + $0x20] sm:$0xff] %v264
    %297 = vst [vmem:[#allocation5 + $0x28] sm:$0xff] %v265
    %298 = vst [vmem:[#allocation5 + $0x30] sm:$0xff] %v266
    %299 = vst [vmem:[#allocation5 + $0x38] sm:$0xff] %v267
    %300 = vst [vmem:[#allocation5 + $0x40] sm:$0xff] %v268
    %301 = vst [vmem:[#allocation5 + $0x48] sm:$0xff] %v269
    %302 = vst [vmem:[#allocation5 + $0x50] sm:$0xff] %v270
    %303 = vst [vmem:[#allocation5 + $0x58] sm:$0xff] %v271
    %304 = vst [vmem:[#allocation5 + $0x60] sm:$0xff] %v272
    %305 = vst [vmem:[#allocation5 + $0x68] sm:$0xff] %v273
    %306 = vst [vmem:[#allocation5 + $0x70] sm:$0xff] %v274
    %307 = vst [vmem:[#allocation5 + $0x78] sm:$0xff] %v275
    %308 = vst [vmem:[#allocation5 + $0x80] sm:$0xff] %v276
    %309 = vst [vmem:[#allocation5 + $0x88] sm:$0xff] %v277
    %310 = vst [vmem:[#allocation5 + $0x90] sm:$0xff] %v278
    %311 = vst [vmem:[#allocation5 + $0x98] sm:$0xff] %v279
    %312 = vst [vmem:[#allocation5 + $0xa0] sm:$0xff] %v280
    %313 = vst [vmem:[#allocation5 + $0xa8] sm:$0xff] %v281
    %314 = vst [vmem:[#allocation5 + $0xb0] sm:$0xff] %v282
    %315 = vst [vmem:[#allocation5 + $0xb8] sm:$0xff] %v283
    %316 = vst [vmem:[#allocation5 + $0xc0] sm:$0xff] %v284
    %317 = vst [vmem:[#allocation5 + $0xc8] sm:$0xff] %v285
    %318 = vst [vmem:[#allocation5 + $0xd0] sm:$0xff] %v286
    %319 = vst [vmem:[#allocation5 + $0xd8] sm:$0xff] %v287
    %320 = vst [vmem:[#allocation5 + $0xe0] sm:$0xff] %v288
    %321 = vst [vmem:[#allocation5 + $0xe8] sm:$0xff] %v289
    %322 = vst [vmem:[#allocation5 + $0xf0] sm:$0xff] %v290
    %323 = vst [vmem:[#allocation5 + $0xf8] sm:$0xff] %v291
    // Predicated region
    $region18: #{tpu_custom_call.1} parent=1 // pred_check
      _
    $region19: #{tpu_custom_call.1} parent=1 // pred_check_branch
      %325 = sbr.rel (0) target = $region21
    $region20: #{tpu_custom_call.1} parent=1 // pred_region
      %327 = vsyncadd [#allocation4], 0
      %s328 = sshll.u32 [#allocation5], 4
      %s329 = int_to_ptr.vmem [resolvable:$true] %s328
      %s330 = sshll.u32 %s3, 4
      %s331 = int_to_ptr.hbm [resolvable:$true] %s330
      %336 = dma.vmem_to_hbm [thread:$0]  %s329, 4096, %s331, [#allocation4], 256, 256, 16
    $region21: #{tpu_custom_call.1} parent=1 // pred_fallthru
      _
    // Predicated region
    $region22: #{tpu_custom_call.1} parent=1 // pred_check
      _
    $region23: #{tpu_custom_call.1} parent=1 // pred_check_branch
      %338 = sbr.rel (0) target = $region25
    $region24: #{tpu_custom_call.1} parent=1 // pred_region
      %340 = dma.done [#allocation4], 4096
    $region25: #{tpu_custom_call.1} parent=1 // pred_fallthru
      _
    %341 = vsyncpa [#allocation3], 1
    %342 = vsyncpa [#allocation4], 1

</llo_original>
